<compile_context>
chip_gen: v5e
topology: v5e:2x2
jax: 0.10.0
libtpu: 0.0.40
codegen_flags: <defaults>
</compile_context>

<pallas_src>
import functools

import jax
import jax.numpy as jnp
from jax.experimental import pallas as pl
from jax.experimental.pallas import tpu as pltpu


def cca_kernel(x_ref, w1t_ref, b1_ref, w2t_ref, b2_ref, out_ref, *, inv_hw):
    # x_ref: (B, C, HW) in the native input dtype.
    # ---- channel statistics (f32, two-pass like the PyTorch module) --------
    xf = x_ref[...].astype(jnp.float32)                      # (B, C, HW)
    mean = jnp.sum(xf, axis=-1) * inv_hw                     # (B, C)
    d = xf - mean[:, :, None]
    var = jnp.sum(d * d, axis=-1) * inv_hw                   # (B, C), >= 0
    y = jnp.sqrt(var) + mean                                 # contrast + avg_pool

    # ---- conv_du: 1x1 convs == tiny dense matmuls over channels (MXU, ------
    # latency-only, <1% of wall; weights are pre-transposed in the wrapper).
    z = jnp.dot(y, w1t_ref[...], preferred_element_type=jnp.float32) + b1_ref[...]
    z = jnp.maximum(z, 0.0)                                  # ReLU    (B, C_red)
    s = jnp.dot(z, w2t_ref[...], preferred_element_type=jnp.float32) + b2_ref[...]
    s = jax.nn.sigmoid(s)                                    # Sigmoid (B, C)

    # ---- per-channel scale, broadcast over the lane (spatial) axis ---------
    # Multiply in the native dtype (packed bf16 on v6e/v7x; same op for f32)
    # so the store stays lane-dense and no extra f32 block temp is needed.
    scale = s.astype(x_ref.dtype)
    out_ref[...] = (x_ref[...] * scale[:, :, None]).astype(out_ref.dtype)


def _vmem_capacity_bytes():
    """Physical VMEM per TensorCore; conservative fallback (v7x = 64 MiB)."""
    try:
        info = pltpu.get_tpu_info()
        cap = getattr(info, "vmem_capacity_bytes", None)
        if cap:
            return int(cap)
    except Exception:
        pass
    return 64 * 1024 * 1024


def cca_layer(x, w1, b1, w2, b2):
    """x: (N, C, H, W); w1: (C_red, C); b1: (C_red,); w2: (C, C_red); b2: (C,)."""
    N, C, H, W = x.shape
    C_red = w1.shape[0]
    hw = H * W

    # Lane-dense layout: flatten spatial into the last axis.  Contiguous
    # reshape is free; no pad / slice HBM round trips.
    xf = x.reshape(N, C, hw)

    # ---- generation-aware VMEM budget --------------------------------------
    itemsize = jnp.dtype(x.dtype).itemsize
    vmem_cap = _vmem_capacity_bytes()                 # 128 MiB v5e/v6e, 64 MiB v7x
    vmem_limit = min(vmem_cap * 3 // 4, 96 * 1024 * 1024)   # 96 / 96 / 48 MiB
    # Per batch-row cost of one grid step:
    #   2 in + 2 out double-buffered pipeline blocks in x.dtype, plus ~3
    #   block-sized f32 temporaries inside the kernel (f32 view, x - mean,
    #   and its square before the reductions fuse/drain).
    row_io = C * hw * itemsize
    row_f32 = C * hw * 4
    per_row = 4 * row_io + 3 * row_f32
    budget_B = max(1, (vmem_limit * 85 // 100) // per_row)
    # TODO(synk): if a single (1, C, hw) block exceeds the budget (very large
    # images, hit at half the size on v7x), split into a spatial-tiled stats
    # pass + a separate scale pass instead of whole-image blocks.

    # Keep at least 2 grid steps (megacore sharding on v7x, DMA/compute
    # overlap on all generations) and never exceed N.
    B = max(1, min(budget_B, -(-N // 2)))
    grid = pl.cdiv(N, B)                              # ragged last block is masked

    # Pre-transpose the tiny weights once (wrapper side, trace time) so the
    # in-kernel dots are plain (B,C)@(C,C_red) and (B,C_red)@(C_red,C).
    w1t = jnp.transpose(w1)                           # (C, C_red)
    w2t = jnp.transpose(w2)                           # (C_red, C)
    b1_2d = b1.reshape(1, C_red)
    b2_2d = b2.reshape(1, C)

    kernel = functools.partial(cca_kernel, inv_hw=1.0 / float(hw))

    out = pl.pallas_call(
        kernel,
        out_shape=jax.ShapeDtypeStruct((N, C, hw), x.dtype),
        grid_spec=pltpu.PrefetchScalarGridSpec(
            num_scalar_prefetch=0,
            grid=(grid,),
            in_specs=[
                # block last two dims == full array dims (C, hw): always legal.
                pl.BlockSpec((B, C, hw), lambda n: (n, 0, 0)),
                pl.BlockSpec((C, C_red), lambda n: (0, 0)),
                pl.BlockSpec((1, C_red), lambda n: (0, 0)),
                pl.BlockSpec((C_red, C), lambda n: (0, 0)),
                pl.BlockSpec((1, C), lambda n: (0, 0)),
            ],
            out_specs=pl.BlockSpec((B, C, hw), lambda n: (n, 0, 0)),
        ),
        compiler_params=pltpu.CompilerParams(
            dimension_semantics=("parallel",),
            vmem_limit_bytes=vmem_limit,
        ),
    )(xf, w1t, b1_2d, w2t, b2_2d)

    return out.reshape(N, C, H, W)


def cca_reference(x, w1, b1, w2, b2):
    """Pure-JAX reference mirroring the PyTorch module (two-pass stats)."""
    hw = x.shape[2] * x.shape[3]
    mean = jnp.sum(x, axis=(2, 3), keepdims=True) / hw
    var = jnp.sum((x - mean) ** 2, axis=(2, 3), keepdims=True) / hw
    std = jnp.sqrt(var)
    y = std + mean                                            # (N, C, 1, 1)
    yv = y[:, :, 0, 0]                                        # (N, C)
    z = jnp.maximum(yv @ w1.T + b1, 0.0)                      # (N, C_red)
    s = jax.nn.sigmoid(z @ w2.T + b2)                         # (N, C)
    return x * s[:, :, None, None]


if __name__ == "__main__":
    # Small shapes consistent with the module: channel=32, reduction=16 -> C_red=2
    N, C, H, W = 2, 32, 16, 16
    reduction = 16
    C_red = C // reduction

    key = jax.random.PRNGKey(0)
    kx, kw1, kb1, kw2, kb2 = jax.random.split(key, 5)

    x = jax.random.normal(kx, (N, C, H, W), dtype=jnp.float32)
    # Deterministic synthetic parameters (Conv2d 1x1 weights squeezed to 2-D)
    w1 = jax.random.normal(kw1, (C_red, C), dtype=jnp.float32) * 0.1
    b1 = jax.random.normal(kb1, (C_red,), dtype=jnp.float32) * 0.1
    w2 = jax.random.normal(kw2, (C, C_red), dtype=jnp.float32) * 0.1
    b2 = jax.random.normal(kb2, (C,), dtype=jnp.float32) * 0.1

    out = cca_layer(x, w1, b1, w2, b2)
    out = jax.block_until_ready(out)

    ref = cca_reference(x, w1, b1, w2, b2)
    assert out.shape == (N, C, H, W)
    assert jnp.allclose(out, ref, atol=2e-5, rtol=1e-5), "mismatch vs reference"

    print("KERNEL_OK")
</pallas_src>

<mosaic_0001>
module attributes {stable_mosaic.version = 11 : i64} {
  func.func @cca_kernel(%arg0: i32, %arg1: memref<1x32x256xf32, #tpu.memory_space<vmem>>, %arg2: memref<32x2xf32, #tpu.memory_space<vmem>>, %arg3: memref<1x2xf32, #tpu.memory_space<vmem>>, %arg4: memref<2x32xf32, #tpu.memory_space<vmem>>, %arg5: memref<1x32xf32, #tpu.memory_space<vmem>>, %arg6: memref<1x32x256xf32, #tpu.memory_space<vmem>>) attributes {dimension_semantics = [#tpu.dimension_semantics<parallel>], iteration_bounds = array<i64: 2>, scalar_prefetch = 0 : i64, scratch_operands = 0 : i64, tpu.core_type = #tpu.core_type<tc>, window_params = [{transform_indices = @transform_0, window_bounds = array<i64: 1, 32, 256>}, {pipeline_mode = #tpu.pipeline_mode<synchronous>, transform_indices = @transform_1, window_bounds = array<i64: 32, 2>}, {pipeline_mode = #tpu.pipeline_mode<synchronous>, transform_indices = @transform_2, window_bounds = array<i64: 1, 2>}, {pipeline_mode = #tpu.pipeline_mode<synchronous>, transform_indices = @transform_3, window_bounds = array<i64: 2, 32>}, {pipeline_mode = #tpu.pipeline_mode<synchronous>, transform_indices = @transform_4, window_bounds = array<i64: 1, 32>}, {transform_indices = @transform_5, window_bounds = array<i64: 1, 32, 256>}]} {
    %c0 = arith.constant 0 : index
    %c0_0 = arith.constant 0 : index
    %c0_1 = arith.constant 0 : index
    %0 = vector.load %arg1[%c0, %c0_0, %c0_1] : memref<1x32x256xf32, #tpu.memory_space<vmem>>, vector<1x32x256xf32>
    %cst = arith.constant dense<0.000000e+00> : vector<1x32xf32>
    %1 = vector.multi_reduction <add>, %0, %cst [2] : vector<1x32x256xf32> to vector<1x32xf32>
    %cst_2 = arith.constant 3.906250e-03 : f32
    %2 = vector.broadcast %cst_2 : f32 to vector<1x32xf32>
    %3 = arith.mulf %1, %2 : vector<1x32xf32>
    %4 = vector.shape_cast %3 : vector<1x32xf32> to vector<1x32x1xf32>
    %5 = vector.broadcast %4 : vector<1x32x1xf32> to vector<1x32x256xf32>
    %6 = arith.subf %0, %5 : vector<1x32x256xf32>
    %7 = arith.mulf %6, %6 : vector<1x32x256xf32>
    %cst_3 = arith.constant dense<0.000000e+00> : vector<1x32xf32>
    %8 = vector.multi_reduction <add>, %7, %cst_3 [2] : vector<1x32x256xf32> to vector<1x32xf32>
    %cst_4 = arith.constant 3.906250e-03 : f32
    %9 = vector.broadcast %cst_4 : f32 to vector<1x32xf32>
    %10 = arith.mulf %8, %9 : vector<1x32xf32>
    %11 = math.sqrt %10 : vector<1x32xf32>
    %12 = arith.addf %11, %3 : vector<1x32xf32>
    %c0_5 = arith.constant 0 : index
    %c0_6 = arith.constant 0 : index
    %13 = vector.load %arg2[%c0_5, %c0_6] : memref<32x2xf32, #tpu.memory_space<vmem>>, vector<32x2xf32>
    %cst_7 = arith.constant dense<0.000000e+00> : vector<1x2xf32>
    %14 = tpu.matmul %12, %13, %cst_7 {dimension_numbers = #tpu.dot_dimension_numbers<[1], [0], [0], [1], [0, 0, 1, 1], [], []>} : vector<1x32xf32>, vector<32x2xf32>, vector<1x2xf32> -> vector<1x2xf32>
    %c0_8 = arith.constant 0 : index
    %c0_9 = arith.constant 0 : index
    %15 = vector.load %arg3[%c0_8, %c0_9] : memref<1x2xf32, #tpu.memory_space<vmem>>, vector<1x2xf32>
    %16 = arith.addf %14, %15 : vector<1x2xf32>
    %cst_10 = arith.constant 0.000000e+00 : f32
    %17 = vector.broadcast %cst_10 : f32 to vector<1x2xf32>
    %18 = arith.maximumf %16, %17 : vector<1x2xf32>
    %c0_11 = arith.constant 0 : index
    %c0_12 = arith.constant 0 : index
    %19 = vector.load %arg4[%c0_11, %c0_12] : memref<2x32xf32, #tpu.memory_space<vmem>>, vector<2x32xf32>
    %cst_13 = arith.constant dense<0.000000e+00> : vector<1x32xf32>
    %20 = tpu.matmul %18, %19, %cst_13 {dimension_numbers = #tpu.dot_dimension_numbers<[1], [0], [0], [1], [0, 0, 1, 1], [], []>} : vector<1x2xf32>, vector<2x32xf32>, vector<1x32xf32> -> vector<1x32xf32>
    %c0_14 = arith.constant 0 : index
    %c0_15 = arith.constant 0 : index
    %21 = vector.load %arg5[%c0_14, %c0_15] : memref<1x32xf32, #tpu.memory_space<vmem>>, vector<1x32xf32>
    %22 = arith.addf %20, %21 : vector<1x32xf32>
    %23 = arith.negf %22 : vector<1x32xf32>
    %24 = math.exp %23 : vector<1x32xf32>
    %cst_16 = arith.constant 1.000000e+00 : f32
    %25 = vector.broadcast %cst_16 : f32 to vector<1x32xf32>
    %26 = arith.addf %25, %24 : vector<1x32xf32>
    %27 = arith.divf %25, %26 : vector<1x32xf32>
    %c0_17 = arith.constant 0 : index
    %c0_18 = arith.constant 0 : index
    %c0_19 = arith.constant 0 : index
    %28 = vector.load %arg1[%c0_17, %c0_18, %c0_19] : memref<1x32x256xf32, #tpu.memory_space<vmem>>, vector<1x32x256xf32>
    %29 = vector.shape_cast %27 : vector<1x32xf32> to vector<1x32x1xf32>
    %30 = vector.broadcast %29 : vector<1x32x1xf32> to vector<1x32x256xf32>
    %31 = arith.mulf %28, %30 : vector<1x32x256xf32>
    %c0_20 = arith.constant 0 : index
    %c0_21 = arith.constant 0 : index
    %c0_22 = arith.constant 0 : index
    %32 = vector.load %arg6[%c0_20, %c0_21, %c0_22] : memref<1x32x256xf32, #tpu.memory_space<vmem>>, vector<1x32x256xf32>
    tpu.vector_store %arg6[%c0_20, %c0_21, %c0_22], %31 {strides = array<i32>} : memref<1x32x256xf32, #tpu.memory_space<vmem>>, vector<1x32x256xf32>,
    return
  }
  func.func @transform_0(%arg0: i32) -> (i32, i32, i32) {
    %c0_i32 = arith.constant 0 : i32
    %c0_i32_0 = arith.constant 0 : i32
    %c0_i32_1 = arith.constant 0 : i32
    return %arg0, %c0_i32, %c0_i32_0 : i32, i32, i32
  }
  func.func @transform_1(%arg0: i32) -> (i32, i32) {
    %c0_i32 = arith.constant 0 : i32
    %c0_i32_0 = arith.constant 0 : i32
    %c0_i32_1 = arith.constant 0 : i32
    return %c0_i32, %c0_i32_0 : i32, i32
  }
  func.func @transform_2(%arg0: i32) -> (i32, i32) {
    %c0_i32 = arith.constant 0 : i32
    %c0_i32_0 = arith.constant 0 : i32
    %c0_i32_1 = arith.constant 0 : i32
    return %c0_i32, %c0_i32_0 : i32, i32
  }
  func.func @transform_3(%arg0: i32) -> (i32, i32) {
    %c0_i32 = arith.constant 0 : i32
    %c0_i32_0 = arith.constant 0 : i32
    %c0_i32_1 = arith.constant 0 : i32
    return %c0_i32, %c0_i32_0 : i32, i32
  }
  func.func @transform_4(%arg0: i32) -> (i32, i32) {
    %c0_i32 = arith.constant 0 : i32
    %c0_i32_0 = arith.constant 0 : i32
    %c0_i32_1 = arith.constant 0 : i32
    return %c0_i32, %c0_i32_0 : i32, i32
  }
  func.func @transform_5(%arg0: i32) -> (i32, i32, i32) {
    %c0_i32 = arith.constant 0 : i32
    %c0_i32_0 = arith.constant 0 : i32
    %c0_i32_1 = arith.constant 0 : i32
    return %arg0, %c0_i32, %c0_i32_0 : i32, i32, i32
  }
}

</mosaic_0001>

<llo_original>
// kernel: tpu_custom_call.1
$region0: #{tpu_custom_call.1}
  #allocation0 [shape = 'u32[]', space=smem, size = 0x4, offset = 0x4, fixed_abs, tag = 'smem constant byte address 0x4 - core index']
  #allocation1 [shape = 'u32[72,128]{1,0:T(1,128)}', space=vmem, size = 0x9000, scoped, tag = 'internal scratch']
  %s0 = inlined_call_operand.hbm [shape: f32[2,32,256], index: 0, kind: input, shape index: {}]
  %s1 = inlined_call_operand.vmem [shape: f32[32,2], index: 1, kind: input, shape index: {}]
  %s2 = inlined_call_operand.vmem [shape: f32[1,2], index: 2, kind: input, shape index: {}]
  %s3 = inlined_call_operand.vmem [shape: f32[2,32], index: 3, kind: input, shape index: {}]
  %s4 = inlined_call_operand.vmem [shape: f32[1,32], index: 4, kind: input, shape index: {}]
  %s5 = inlined_call_operand.hbm [shape: f32[2,32,256], index: 5, kind: output, shape index: {}]
  %s6 = sld [smem:[#allocation0]]
  $region57: #{tpu_custom_call.1} parent=0
    _
  %s8 = ssub.s32 1, %s6
  %s9 = scalar_select 0, %s8, %s6
  $region1: #{tpu_custom_call.1} parent=0
    #allocation2 [shape = 'u8[65536]{0}', space=vmem, size = 0x10000, scoped, tag = 'input window, operand 0']
    #allocation3 [shape = 's32[2]{0}', space=sflag, size = 0x8, scoped, tag = 'scoped memory for tpu_custom_call.1']
    #allocation4 [shape = 's32[2]{0}', space=sflag, size = 0x8, scoped, tag = 'scoped memory for tpu_custom_call.1']
    #allocation5 [shape = 'u8[65536]{0}', space=vmem, size = 0x10000, scoped, tag = 'output window, operand 0']
    %10 = vsyncpa [#allocation3], 0
    %s11 = scalar_lea.sflag [#allocation3], 1
    %12 = vsyncpa %s11, 0
    %13 = vsyncpa [#allocation4], 0
    %s14 = scalar_lea.sflag [#allocation4], 1
    %15 = vsyncpa %s14, 0
    loop: start=0, step=1, limit=4
    $region2: #{tpu_custom_call.1} parent=1 // loop_pre_header
      _
    $region3: #{tpu_custom_call.1} parent=1 // loop_header
      %s17 = sphi 0, %s21
      %p18 = scmp.ge.s32.totalorder %s17, 4
      %s27 = sphi 0, %s29
      %s30 = sphi 0, %s27
      %s31 = sphi 0, %s30
      %s47 = sphi 0, %s31
      %s51 = sphi 0, %s51
      %s53 = sphi 0, %s51
      %s54 = sphi 0, %s53
      %s68 = sphi 0, %s54
      %s72 = sphi 0, %s72
      %s74 = sphi 0, %s72
      %s75 = sphi 0, %s74
      %s89 = sphi 0, %s75
      %s93 = sphi 0, %s93
      %s95 = sphi 0, %s93
      %s96 = sphi 0, %s95
      %s110 = sphi 0, %s96
      %s114 = sphi 0, %s114
      %s116 = sphi 0, %s114
      %s117 = sphi 0, %s116
      %s131 = sphi 0, %s117
      %s137 = sphi 0, %s139
      %s140 = sphi 0, %s137
      %s141 = sphi 0, %s140
      %s157 = sphi 0, %s141
    $region4: #{tpu_custom_call.1} parent=1 // loop_header_branch
      %20 = sbr.rel (%p18) target = $region8
    $region5: #{tpu_custom_call.1} parent=1 // loop_body
      %s22 = ssub.s32 %s17, 1
      %s23 = ssub.s32 %s17, 2
      %s24 = sadd.s32 %s17, 1
      %s25 = ssub.s32 %s17, %s24
      %p26 = scmp.eq.s32.totalorder %s25, 0
      %s28 = sadd.s32 %s27, 1
      %s29 = scalar_select %p26, %s27, %s28
      %p32 = pneg %p26
      %p33 = scmp.eq.s32.totalorder %s17, 1
      %p34 = por %p32, %p33
      %p35 = scmp.ne.s32.totalorder %s27, %s30
      %p36 = scmp.eq.s32.totalorder %s17, 0
      %p37 = por %p35, %p36
      %p38 = scmp.ne.s32.totalorder %s27, %s30
      %p39 = scmp.eq.s32.totalorder %s22, 1
      %p40 = por %p38, %p39
      %p41 = scmp.ne.s32.totalorder %s30, %s31
      %p42 = scmp.eq.s32.totalorder %s22, 0
      %p43 = por %p41, %p42
      %p44 = scmp.ne.s32.totalorder %s30, %s31
      %p45 = scmp.eq.s32.totalorder %s23, 1
      %p46 = por %p44, %p45
      %p48 = scmp.ne.s32.totalorder %s31, %s47
      %p49 = scmp.eq.s32.totalorder %s23, 0
      %p50 = por %p48, %p49
      %s52 = sadd.s32 %s51, 1
      %p55 = scmp.eq.s32.totalorder %s17, 1
      %p56 = scmp.ne.s32.totalorder %s51, %s53
      %p57 = scmp.eq.s32.totalorder %s17, 0
      %p58 = por %p56, %p57
      %p59 = scmp.ne.s32.totalorder %s51, %s53
      %p60 = scmp.eq.s32.totalorder %s22, 1
      %p61 = por %p59, %p60
      %p62 = scmp.ne.s32.totalorder %s53, %s54
      %p63 = scmp.eq.s32.totalorder %s22, 0
      %p64 = por %p62, %p63
      %p65 = scmp.ne.s32.totalorder %s53, %s54
      %p66 = scmp.eq.s32.totalorder %s23, 1
      %p67 = por %p65, %p66
      %p69 = scmp.ne.s32.totalorder %s54, %s68
      %p70 = scmp.eq.s32.totalorder %s23, 0
      %p71 = por %p69, %p70
      %s73 = sadd.s32 %s72, 1
      %p76 = scmp.eq.s32.totalorder %s17, 1
      %p77 = scmp.ne.s32.totalorder %s72, %s74
      %p78 = scmp.eq.s32.totalorder %s17, 0
      %p79 = por %p77, %p78
      %p80 = scmp.ne.s32.totalorder %s72, %s74
      %p81 = scmp.eq.s32.totalorder %s22, 1
      %p82 = por %p80, %p81
      %p83 = scmp.ne.s32.totalorder %s74, %s75
      %p84 = scmp.eq.s32.totalorder %s22, 0
      %p85 = por %p83, %p84
      %p86 = scmp.ne.s32.totalorder %s74, %s75
      %p87 = scmp.eq.s32.totalorder %s23, 1
      %p88 = por %p86, %p87
      %p90 = scmp.ne.s32.totalorder %s75, %s89
      %p91 = scmp.eq.s32.totalorder %s23, 0
      %p92 = por %p90, %p91
      %s94 = sadd.s32 %s93, 1
      %p97 = scmp.eq.s32.totalorder %s17, 1
      %p98 = scmp.ne.s32.totalorder %s93, %s95
      %p99 = scmp.eq.s32.totalorder %s17, 0
      %p100 = por %p98, %p99
      %p101 = scmp.ne.s32.totalorder %s93, %s95
      %p102 = scmp.eq.s32.totalorder %s22, 1
      %p103 = por %p101, %p102
      %p104 = scmp.ne.s32.totalorder %s95, %s96
      %p105 = scmp.eq.s32.totalorder %s22, 0
      %p106 = por %p104, %p105
      %p107 = scmp.ne.s32.totalorder %s95, %s96
      %p108 = scmp.eq.s32.totalorder %s23, 1
      %p109 = por %p107, %p108
      %p111 = scmp.ne.s32.totalorder %s96, %s110
      %p112 = scmp.eq.s32.totalorder %s23, 0
      %p113 = por %p111, %p112
      %s115 = sadd.s32 %s114, 1
      %p118 = scmp.eq.s32.totalorder %s17, 1
      %p119 = scmp.ne.s32.totalorder %s114, %s116
      %p120 = scmp.eq.s32.totalorder %s17, 0
      %p121 = por %p119, %p120
      %p122 = scmp.ne.s32.totalorder %s114, %s116
      %p123 = scmp.eq.s32.totalorder %s22, 1
      %p124 = por %p122, %p123
      %p125 = scmp.ne.s32.totalorder %s116, %s117
      %p126 = scmp.eq.s32.totalorder %s22, 0
      %p127 = por %p125, %p126
      %p128 = scmp.ne.s32.totalorder %s116, %s117
      %p129 = scmp.eq.s32.totalorder %s23, 1
      %p130 = por %p128, %p129
      %p132 = scmp.ne.s32.totalorder %s117, %s131
      %p133 = scmp.eq.s32.totalorder %s23, 0
      %p134 = por %p132, %p133
      %s135 = ssub.s32 %s17, %s24
      %p136 = scmp.eq.s32.totalorder %s135, 0
      %s138 = sadd.s32 %s137, 1
      %s139 = scalar_select %p136, %s137, %s138
      %p142 = pneg %p136
      %p143 = scmp.eq.s32.totalorder %s17, 1
      %p144 = por %p142, %p143
      %p145 = scmp.ne.s32.totalorder %s137, %s140
      %p146 = scmp.eq.s32.totalorder %s17, 0
      %p147 = por %p145, %p146
      %p148 = scmp.ne.s32.totalorder %s137, %s140
      %p149 = scmp.eq.s32.totalorder %s22, 1
      %p150 = por %p148, %p149
      %p151 = scmp.ne.s32.totalorder %s140, %s141
      %p152 = scmp.eq.s32.totalorder %s22, 0
      %p153 = por %p151, %p152
      %p154 = scmp.ne.s32.totalorder %s140, %s141
      %p155 = scmp.eq.s32.totalorder %s23, 1
      %p156 = por %p154, %p155
      %p158 = scmp.ne.s32.totalorder %s141, %s157
      %p159 = scmp.eq.s32.totalorder %s23, 0
      %p160 = por %p158, %p159
      %p161 = scmp.le.s32.totalorder 1, %s17
      %p162 = scmp.lt.s32.totalorder %s17, 3
      %p163 = pnand %p161, %p162
      %p164 = pneg %p163
      // Predicated region
      $region9: #{tpu_custom_call.1} parent=5 // pred_check
        _
      $region10: #{tpu_custom_call.1} parent=5 // pred_check_branch
        %166 = sbr.rel (%p163) target = $region12
      $region11: #{tpu_custom_call.1} parent=5 // pred_region
        %s167 = ssub.s32 %s17, 1
        // Predicated region
        $region13: #{tpu_custom_call.1} parent=11 // pred_check
          %p168 = pneg %p64
        $region14: #{tpu_custom_call.1} parent=11 // pred_check_branch
          %170 = sbr.rel (%p168) target = $region16
        $region15: #{tpu_custom_call.1} parent=11 // pred_region
          _
        $region16: #{tpu_custom_call.1} parent=11 // pred_fallthru
          _
        // Predicated region
        $region17: #{tpu_custom_call.1} parent=11 // pred_check
          %p171 = pneg %p85
        $region18: #{tpu_custom_call.1} parent=11 // pred_check_branch
          %173 = sbr.rel (%p171) target = $region20
        $region19: #{tpu_custom_call.1} parent=11 // pred_region
          _
        $region20: #{tpu_custom_call.1} parent=11 // pred_fallthru
          _
        // Predicated region
        $region21: #{tpu_custom_call.1} parent=11 // pred_check
          %p174 = pneg %p106
        $region22: #{tpu_custom_call.1} parent=11 // pred_check_branch
          %176 = sbr.rel (%p174) target = $region24
        $region23: #{tpu_custom_call.1} parent=11 // pred_region
          _
        $region24: #{tpu_custom_call.1} parent=11 // pred_fallthru
          _
        // Predicated region
        $region25: #{tpu_custom_call.1} parent=11 // pred_check
          %p177 = pneg %p127
        $region26: #{tpu_custom_call.1} parent=11 // pred_check_branch
          %179 = sbr.rel (%p177) target = $region28
        $region27: #{tpu_custom_call.1} parent=11 // pred_region
          _
        $region28: #{tpu_custom_call.1} parent=11 // pred_fallthru
          _
      $region12: #{tpu_custom_call.1} parent=5 // pred_fallthru
        _
      %p180 = scmp.lt.s32.totalorder %s17, 2
      // Predicated region
      $region29: #{tpu_custom_call.1} parent=5 // pred_check
        %p181 = pneg %p180
      $region30: #{tpu_custom_call.1} parent=5 // pred_check_branch
        %183 = sbr.rel (%p181) target = $region32
      $region31: #{tpu_custom_call.1} parent=5 // pred_region
        // Predicated region
        $region33: #{tpu_custom_call.1} parent=31 // pred_check
          %p184 = pneg %p37
        $region34: #{tpu_custom_call.1} parent=31 // pred_check_branch
          %186 = sbr.rel (%p184) target = $region36
        $region35: #{tpu_custom_call.1} parent=31 // pred_region
          %s187 = sand.u32 %s27, 1
          %s188 = scalar_lea.sflag [#allocation3], %s187
          %s189 = sand.u32 %s27, 1
          %s190 = smul.addr %s189, 64
          %s191 = scalar_lea.vmem [#allocation2], %s190
          %193 = vsyncadd %s188, 0
          %s194 = smul.addr %s17, 8
          %s195 = smul.addr %s194, 8
          %s196 = scalar_lea.hbm %s0, %s195
          %s197 = sshll.u32 %s196, 4
          %s198 = int_to_ptr.hbm [resolvable:$true] %s197
          %s199 = sshll.u32 %s191, 4
          %s200 = int_to_ptr.vmem [resolvable:$true] %s199
          %205 = dma.hbm_to_vmem [thread:$0]  %s198, 1024, %s200, %s188, 256, 256, 16
        $region36: #{tpu_custom_call.1} parent=31 // pred_fallthru
          _
      $region32: #{tpu_custom_call.1} parent=5 // pred_fallthru
        _
      %p206 = scmp.le.s32.totalorder 1, %s17
      %p207 = scmp.lt.s32.totalorder %s17, 3
      %p208 = pnand %p206, %p207
      %p209 = pneg %p208
      // Predicated region
      $region37: #{tpu_custom_call.1} parent=5 // pred_check
        _
      $region38: #{tpu_custom_call.1} parent=5 // pred_check_branch
        %211 = sbr.rel (%p208) target = $region40
      $region39: #{tpu_custom_call.1} parent=5 // pred_region
        %s212 = ssub.s32 %s17, 1
        %s213 = sand.u32 %s30, 1
        %s214 = scalar_lea.sflag [#allocation3], %s213
        %s215 = sand.u32 %s30, 1
        %s216 = smul.addr %s215, 64
        %s217 = scalar_lea.vmem [#allocation2], %s216
        // Predicated region
        $region41: #{tpu_custom_call.1} parent=39 // pred_check
          %p218 = pneg %p43
        $region42: #{tpu_custom_call.1} parent=39 // pred_check_branch
          %220 = sbr.rel (%p218) target = $region44
        $region43: #{tpu_custom_call.1} parent=39 // pred_region
          %222 = dma.done %s214, 1024
        $region44: #{tpu_custom_call.1} parent=39 // pred_fallthru
          _
        %s223 = sand.u32 %s30, 1
        %s224 = scalar_lea.sflag [#allocation3], %s223
        %s225 = sand.u32 %s30, 1
        %s226 = smul.addr %s225, 64
        %s227 = scalar_lea.vmem [#allocation2], %s226
        %p228 = pneg %p43
        %p229 = pneg %p40
        %p230 = pneg %p64
        %p231 = pneg %p61
        %p232 = pneg %p85
        %p233 = pneg %p82
        %p234 = pneg %p106
        %p235 = pneg %p103
        %p236 = pneg %p127
        %p237 = pneg %p124
        %p238 = pneg %p153
        %p239 = pneg %p150
        %s240 = sand.u32 %s140, 1
        %s241 = scalar_lea.sflag [#allocation4], %s240
        %s242 = sand.u32 %s140, 1
        %s243 = smul.addr %s242, 64
        %s244 = scalar_lea.vmem [#allocation5], %s243
        %v245 = vld [vmem:[%s217] sm:$0xff]
        %v246 = vld [vmem:[%s217 + $0x8] sm:$0xff]
        %v247 = vld [vmem:[%s217 + $0x10] sm:$0xff]
        %v248 = vld [vmem:[%s217 + $0x18] sm:$0xff]
        %v249 = vld [vmem:[%s217 + $0x20] sm:$0xff]
        %v250 = vld [vmem:[%s217 + $0x28] sm:$0xff]
        %v251 = vld [vmem:[%s217 + $0x30] sm:$0xff]
        %v252 = vld [vmem:[%s217 + $0x38] sm:$0xff]
        %v253 = vadd.f32 %v245, %v246
        %254 = vadd.xlane.f32.xlu0 %v253
        %v255 = vpop.xlane.xlu0 %254
        %v256 = vadd.f32 %v247, %v248
        %257 = vadd.xlane.f32.xlu0 %v256
        %v258 = vpop.xlane.xlu0 %257
        %v259 = vadd.f32 %v249, %v250
        %260 = vadd.xlane.f32.xlu0 %v259
        %v261 = vpop.xlane.xlu0 %260
        %v262 = vadd.f32 %v251, %v252
        %263 = vadd.xlane.f32.xlu0 %v262
        %v264 = vpop.xlane.xlu0 %263
        %v265 = vmul.f32 %v255, 0.00390625
        %v266 = vmul.f32 %v258, 0.00390625
        %v267 = vmul.f32 %v261, 0.00390625
        %v268 = vmul.f32 %v264, 0.00390625
        %v269 = vsub.f32 %v245, %v265
        %v270 = vsub.f32 %v246, %v265
        %v271 = vsub.f32 %v247, %v266
        %v272 = vsub.f32 %v248, %v266
        %v273 = vsub.f32 %v249, %v267
        %v274 = vsub.f32 %v250, %v267
        %v275 = vsub.f32 %v251, %v268
        %v276 = vsub.f32 %v252, %v268
        %v277 = vmul.f32 %v269, %v269
        %v278 = vmul.f32 %v270, %v270
        %v279 = vmul.f32 %v271, %v271
        %v280 = vmul.f32 %v272, %v272
        %v281 = vmul.f32 %v273, %v273
        %v282 = vmul.f32 %v274, %v274
        %v283 = vmul.f32 %v275, %v275
        %v284 = vmul.f32 %v276, %v276
        %v285 = vadd.f32 %v277, %v278
        %286 = vadd.xlane.f32.xlu0 %v285
        %v287 = vpop.xlane.xlu0 %286
        %v288 = vadd.f32 %v279, %v280
        %289 = vadd.xlane.f32.xlu0 %v288
        %v290 = vpop.xlane.xlu0 %289
        %v291 = vadd.f32 %v281, %v282
        %292 = vadd.xlane.f32.xlu0 %v291
        %v293 = vpop.xlane.xlu0 %292
        %v294 = vadd.f32 %v283, %v284
        %295 = vadd.xlane.f32.xlu0 %v294
        %v296 = vpop.xlane.xlu0 %295
        %v297 = vmul.f32 %v287, 0.00390625
        %v298 = vmul.f32 %v290, 0.00390625
        %v299 = vmul.f32 %v293, 0.00390625
        %v300 = vmul.f32 %v296, 0.00390625
        %v301 = vrsqrt.pop %v297
        %v302 = vmul.f32 %v301, %v297
        %v303 = vmul.f32 %v302, %v301
        %v304 = vmul.f32 0.5, %v303
        %v305 = vsub.f32 1.5, %v304
        %v306 = vmul.f32 %v301, %v305
        %v307 = vmul.f32 %v297, %v306
        %vm308 = vcmp.eq.f32.partialorder %v297, inf
        %v309 = vsel %vm308, %v297, %v307
        %vm310 = vcmp.eq.f32.partialorder %v297, 0.0
        %v311 = vand.u32 %v297, 2147483648
        %v312 = vsel %vm310, %v311, %v309
        %v313 = vrsqrt.pop %v298
        %v314 = vmul.f32 %v313, %v298
        %v315 = vmul.f32 %v314, %v313
        %v316 = vmul.f32 0.5, %v315
        %v317 = vsub.f32 1.5, %v316
        %v318 = vmul.f32 %v313, %v317
        %v319 = vmul.f32 %v298, %v318
        %vm320 = vcmp.eq.f32.partialorder %v298, inf
        %v321 = vsel %vm320, %v298, %v319
        %vm322 = vcmp.eq.f32.partialorder %v298, 0.0
        %v323 = vand.u32 %v298, 2147483648
        %v324 = vsel %vm322, %v323, %v321
        %v325 = vrsqrt.pop %v299
        %v326 = vmul.f32 %v325, %v299
        %v327 = vmul.f32 %v326, %v325
        %v328 = vmul.f32 0.5, %v327
        %v329 = vsub.f32 1.5, %v328
        %v330 = vmul.f32 %v325, %v329
        %v331 = vmul.f32 %v299, %v330
        %vm332 = vcmp.eq.f32.partialorder %v299, inf
        %v333 = vsel %vm332, %v299, %v331
        %vm334 = vcmp.eq.f32.partialorder %v299, 0.0
        %v335 = vand.u32 %v299, 2147483648
        %v336 = vsel %vm334, %v335, %v333
        %v337 = vrsqrt.pop %v300
        %v338 = vmul.f32 %v337, %v300
        %v339 = vmul.f32 %v338, %v337
        %v340 = vmul.f32 0.5, %v339
        %v341 = vsub.f32 1.5, %v340
        %v342 = vmul.f32 %v337, %v341
        %v343 = vmul.f32 %v300, %v342
        %vm344 = vcmp.eq.f32.partialorder %v300, inf
        %v345 = vsel %vm344, %v300, %v343
        %vm346 = vcmp.eq.f32.partialorder %v300, 0.0
        %v347 = vand.u32 %v300, 2147483648
        %v348 = vsel %vm346, %v347, %v345
        %v349 = vadd.f32 %v312, %v265
        %v350 = vadd.f32 %v324, %v266
        %v351 = vadd.f32 %v336, %v267
        %v352 = vadd.f32 %v348, %v268
        %v353 = vld [vmem:[%s1] sm:$0xff]
        %v354 = vld [vmem:[%s1 + $0x8] sm:$0xff]
        %v355 = vld [vmem:[%s1 + $0x10] sm:$0xff]
        %v356 = vld [vmem:[%s1 + $0x18] sm:$0xff]
        %v357 = vld [vmem:[%s2] sm:$0x1]
        %v362 = vlaneseq
        %v363 = vand.u32 %v362, 127
        %v364 = vperm.slane %v349, %v363
        %v365 = vadd.s32 %v363, 4294967288
        %v366 = vperm.slane %v350, %v365
        %vm367 = vcmask 130112
        %v368 = vsel %vm367, %v366, %v364
        %v369 = vadd.s32 %v363, 4294967280
        %v370 = vperm.slane %v351, %v369
        %vm371 = vcmask 195712
        %v372 = vsel %vm371, %v370, %v368
        %v373 = vadd.s32 %v363, 4294967272
        %v374 = vperm.slane %v352, %v373
        %vm375 = vcmask 261312
        %v376 = vsel %vm375, %v374, %v372
        %vm377 = vcmask 261120
        %v378 = vsel %vm377, %v376, 0
        %380 = vmatpush.msra.mxu0 0.0
        %381 = vmatpush.msra.mxu0 0.0
        %382 = vmatpush.msra.mxu0 0.0
        %383 = vmatpush.msra.mxu0 0.0
        %384 = vmatpush.msra.mxu0 0.0
        %385 = vmatpush.msra.mxu0 0.0
        %386 = vmatpush.msra.mxu0 0.0
        %387 = vmatpush.msra.mxu0 0.0
        %388 = vmatpush.msra.mxu0 0.0
        %389 = vmatpush.msra.mxu0 0.0
        %390 = vmatpush.msra.mxu0 0.0
        %391 = vmatpush.msra.mxu0 0.0
        %392 = vmatpush.msra.mxu0 %v356
        %393 = vmatpush.msra.mxu0 %v355
        %394 = vmatpush.msra.mxu0 %v354
        %395 = vmatpush.msra.mxu0 %v353
        %396 = vmatmul.f32.gmra.mxu0 %v378
        %v397 = vpop.f32.mrf.mxu0
        %v398 = vadd.f32 %v357, %v397
        %399 = vdwg.mxu0
        %v400 = vmax.f32 %v398, 0.0
        %v401 = vld [vmem:[%s3] sm:$0x3]
        %v402 = vld [vmem:[%s4] sm:$0x1]
        %vm403 = vcmask 15360
        %v405 = vsel %vm403, %v400, 0
        %vm407 = vcmask 1041408
        %v409 = vsel %vm407, %v401, 0
        %411 = vmatpush.msra.mxu0 0.0
        %412 = vmatpush.msra.mxu0 0.0
        %413 = vmatpush.msra.mxu0 0.0
        %414 = vmatpush.msra.mxu0 0.0
        %415 = vmatpush.msra.mxu0 0.0
        %416 = vmatpush.msra.mxu0 0.0
        %417 = vmatpush.msra.mxu0 0.0
        %418 = vmatpush.msra.mxu0 0.0
        %419 = vmatpush.msra.mxu0 0.0
        %420 = vmatpush.msra.mxu0 0.0
        %421 = vmatpush.msra.mxu0 0.0
        %422 = vmatpush.msra.mxu0 0.0
        %423 = vmatpush.msra.mxu0 0.0
        %424 = vmatpush.msra.mxu0 0.0
        %425 = vmatpush.msra.mxu0 0.0
        %426 = vmatpush.msra.mxu0 %v409
        %427 = vmatmul.f32.gmra.mxu0 %v405
        %v428 = vpop.f32.mrf.mxu0
        %v429 = vadd.f32 %v402, %v428
        %430 = vdwg.mxu0
        %v431 = vxor.u32 %v429, 2147483648
        %v432 = vmul.f32 %v431, 1.442695
        %v433 = vpow.pop %v432
        %v434 = vadd.f32 %v433, 1.0
        %v435 = vrcp.pop %v434
        %v436 = vmul.f32 %v434, %v435
        %v437 = vsub.f32 1.0, %v436
        %v438 = vmul.f32 %v435, %v437
        %v439 = vadd.f32 %v435, %v438
        %vm440 = vweird.f32 %v434
        %vm441 = vweird.f32 %v435
        %vm442 = vmor %vm440, %vm441
        %v443 = vsel %vm442, %v435, %v439
        %v444 = vand.u32 2147483647, %v434
        %vm445 = vcmp.eq.f32.partialorder %v444, 8.507059e+37
        %v446 = vand.u32 %v434, 2147483648
        %v447 = vor.u32 1.1754944e-38, %v446
        %v448 = vsel %vm445, %v447, %v443
        %v449 = vmul.f32 1.0, %v448
        %v450 = vperm.slane %v449, 0
        %v451 = vlaneseq
        %v452 = vshrl.u32 %v451, 7
        %454 = vset.pattern.permute.xlu0 %v452
        %455 = vperm.xlu0 %454, %v450
        %v456 = vpop.permute.xlu0 %455
        %v457 = vlaneseq
        %v458 = vshrl.u32 %v457, 7
        %v459 = vadd.s32 %v458, 8
        %460 = vset.pattern.permute.xlu0 %v459
        %461 = vperm.xlu0 %460, %v450
        %v462 = vpop.permute.xlu0 %461
        %v463 = vlaneseq
        %v464 = vshrl.u32 %v463, 7
        %v465 = vadd.s32 %v464, 16
        %466 = vset.pattern.permute.xlu0 %v465
        %467 = vperm.xlu0 %466, %v450
        %v468 = vpop.permute.xlu0 %467
        %v469 = vlaneseq
        %v470 = vshrl.u32 %v469, 7
        %v471 = vadd.s32 %v470, 24
        %472 = vset.pattern.permute.xlu0 %v471
        %473 = vperm.xlu0 %472, %v450
        %v474 = vpop.permute.xlu0 %473
        %v475 = vmul.f32 %v245, %v456
        %v476 = vmul.f32 %v246, %v456
        %v477 = vmul.f32 %v247, %v462
        %v478 = vmul.f32 %v248, %v462
        %v479 = vmul.f32 %v249, %v468
        %v480 = vmul.f32 %v250, %v468
        %v481 = vmul.f32 %v251, %v474
        %v482 = vmul.f32 %v252, %v474
        %483 = vst [vmem:[%s244] sm:$0xff] %v475
        %484 = vst [vmem:[%s244 + $0x8] sm:$0xff] %v476
        %485 = vst [vmem:[%s244 + $0x10] sm:$0xff] %v477
        %486 = vst [vmem:[%s244 + $0x18] sm:$0xff] %v478
        %487 = vst [vmem:[%s244 + $0x20] sm:$0xff] %v479
        %488 = vst [vmem:[%s244 + $0x28] sm:$0xff] %v480
        %489 = vst [vmem:[%s244 + $0x30] sm:$0xff] %v481
        %490 = vst [vmem:[%s244 + $0x38] sm:$0xff] %v482
        %s491 = sand.u32 %s140, 1
        %s492 = scalar_lea.sflag [#allocation4], %s491
        %s493 = sand.u32 %s140, 1
        %s494 = smul.addr %s493, 64
        %s495 = scalar_lea.vmem [#allocation5], %s494
        // Predicated region
        $region45: #{tpu_custom_call.1} parent=39 // pred_check
          %p496 = pneg %p150
        $region46: #{tpu_custom_call.1} parent=39 // pred_check_branch
          %498 = sbr.rel (%p496) target = $region48
        $region47: #{tpu_custom_call.1} parent=39 // pred_region
          %500 = vsyncadd %s492, 0
          %s501 = smul.addr %s22, 8
          %s502 = smul.addr %s501, 8
          %s503 = scalar_lea.hbm %s5, %s502
          %s504 = sshll.u32 %s495, 4
          %s505 = int_to_ptr.vmem [resolvable:$true] %s504
          %s506 = sshll.u32 %s503, 4
          %s507 = int_to_ptr.hbm [resolvable:$true] %s506
          %512 = dma.vmem_to_hbm [thread:$0]  %s505, 1024, %s507, %s492, 256, 256, 16
        $region48: #{tpu_custom_call.1} parent=39 // pred_fallthru
          _
      $region40: #{tpu_custom_call.1} parent=5 // pred_fallthru
        _
      %p513 = scmp.le.s32.totalorder 2, %s17
      // Predicated region
      $region49: #{tpu_custom_call.1} parent=5 // pred_check
        %p514 = pneg %p513
      $region50: #{tpu_custom_call.1} parent=5 // pred_check_branch
        %516 = sbr.rel (%p514) target = $region52
      $region51: #{tpu_custom_call.1} parent=5 // pred_region
        %s517 = ssub.s32 %s17, 2
        // Predicated region
        $region53: #{tpu_custom_call.1} parent=51 // pred_check
          %p518 = pneg %p156
        $region54: #{tpu_custom_call.1} parent=51 // pred_check_branch
          %520 = sbr.rel (%p518) target = $region56
        $region55: #{tpu_custom_call.1} parent=51 // pred_region
          %s521 = sand.u32 %s141, 1
          %s522 = scalar_lea.sflag [#allocation4], %s521
          %s523 = sand.u32 %s141, 1
          %s524 = smul.addr %s523, 64
          %s525 = scalar_lea.vmem [#allocation5], %s524
          %527 = dma.done %s522, 1024
        $region56: #{tpu_custom_call.1} parent=51 // pred_fallthru
          _
      $region52: #{tpu_custom_call.1} parent=5 // pred_fallthru
        _
    $region6: #{tpu_custom_call.1} parent=1 // loop_footer
      %s21 = sadd.s32 1, %s17
    $region7: #{tpu_custom_call.1} parent=1 // loop_footer_branch
      %16 = sbr.rel target = $region3
    $region8: #{tpu_custom_call.1} parent=1 // loop_exit
      _
    %528 = vsyncpa [#allocation3], 1
    %s529 = scalar_lea.sflag [#allocation3], 1
    %530 = vsyncpa %s529, 1
    %531 = vsyncpa [#allocation4], 1
    %s532 = scalar_lea.sflag [#allocation4], 1
    %533 = vsyncpa %s532, 1

</llo_original>
